<compile_context>
chip_gen: v6e
topology: v6e:2x2x1
jax: 0.10.0
libtpu: 0.0.40
codegen_flags: <defaults>
</compile_context>

<pallas_src>
import math

import jax
import jax.numpy as jnp
from jax import lax
from jax.experimental import pallas as pl
from jax.experimental.pallas import tpu as pltpu

_LANES = 128
_SUB = 8                  # sublanes per f32 vreg tile (accumulator shape)
_ROW_ALIGN = 16           # row alignment valid for both f32 (8) and bf16 (16) packing
_MAX_BLOCK_ROWS = 4096    # 4096x128 f32 = 2 MiB / input buffer; x2 inputs x2 pipeline bufs = 8 MiB
_VMEM_LIMIT = 48 * 1024 * 1024
_NEG_LOGIT = -1e4         # exp(-1e4) == 0 in f32 -> masked elements contribute exactly 0


def _make_kernel(block_rows, num_blocks, valid_in_last, has_tail):
    """Builds the kernel with all sizes baked in statically (no scalar prefetch needed)."""

    def _accumulate(x_ref, t_ref, bce_out, inter_out, denom_out, *, mask_tail):
        x = x_ref[...].astype(jnp.float32)
        t = t_ref[...].astype(jnp.float32)
        if mask_tail:
            # Element index within this (last) block; anything >= valid_in_last is
            # either wrapper 128-alignment pad or DMA garbage from the partial
            # block -> force it to contribute exactly 0 to every sum.
            idx = (lax.broadcasted_iota(jnp.int32, (block_rows, _LANES), 0) * _LANES
                   + lax.broadcasted_iota(jnp.int32, (block_rows, _LANES), 1))
            valid = idx < valid_in_last
            x = jnp.where(valid, x, _NEG_LOGIT)
            t = jnp.where(valid, t, 0.0)

        # Shared transcendental: e = exp(-|x|)
        e = jnp.exp(-jnp.abs(x))
        # Numerically-stable BCE-with-logits (same formula PyTorch uses):
        #   max(x, 0) - x*t + log(1 + exp(-|x|))
        bce = jnp.maximum(x, 0.0) - x * t + jnp.log1p(e)
        # sigmoid(x) from the same e: x>=0 -> 1/(1+e), x<0 -> e/(1+e).
        # approx EUP reciprocal instead of a divide (v7x EUP relief; hidden on v5e/v6e).
        p = jnp.where(x >= 0.0, 1.0, e) * pl.reciprocal(1.0 + e, approx=True)

        # Block-local partial reduction to one (8, 128) tile (VPU adds only),
        # accumulated into the resident output blocks.
        r = block_rows // _SUB
        bce_out[...] += bce.reshape(r, _SUB, _LANES).sum(axis=0)
        inter_out[...] += (p * t).reshape(r, _SUB, _LANES).sum(axis=0)
        denom_out[...] += (p + t).reshape(r, _SUB, _LANES).sum(axis=0)

    def kernel(x_ref, t_ref, bce_out, inter_out, denom_out):
        i = pl.program_id(0)

        @pl.when(i == 0)
        def _init():
            bce_out[...] = jnp.zeros_like(bce_out)
            inter_out[...] = jnp.zeros_like(inter_out)
            denom_out[...] = jnp.zeros_like(denom_out)

        if has_tail:
            @pl.when(i == num_blocks - 1)
            def _tail():
                _accumulate(x_ref, t_ref, bce_out, inter_out, denom_out, mask_tail=True)

            @pl.when(i != num_blocks - 1)
            def _full():
                _accumulate(x_ref, t_ref, bce_out, inter_out, denom_out, mask_tail=False)
        else:
            _accumulate(x_ref, t_ref, bce_out, inter_out, denom_out, mask_tail=False)

    return kernel


def combined_loss_pallas(outputs, targets, smooth=1.0, dice_weight=0.5):
    """Pallas equivalent of CombinedLoss.forward(outputs, targets) -> scalar f32."""
    n = int(math.prod(outputs.shape))
    x = outputs.reshape(-1)     # contiguous reshape: metadata-only, no HBM copy
    t = targets.reshape(-1)     # native dtype kept; f32 cast happens in-kernel

    rows = pl.cdiv(n, _LANES)
    pad = rows * _LANES - n
    if pad:
        # Only hit when n % 128 != 0 (rare for NN tensors). Padded values are
        # masked in-kernel, so zero-fill is safe for any dtype.
        # TODO(synk): 1-D BlockSpec variant would remove this copy entirely.
        x = jnp.concatenate([x, jnp.zeros((pad,), x.dtype)])
        t = jnp.concatenate([t, jnp.zeros((pad,), t.dtype)])
    x2 = x.reshape(rows, _LANES)
    t2 = t.reshape(rows, _LANES)

    block_rows = min(_MAX_BLOCK_ROWS, _ROW_ALIGN * pl.cdiv(rows, _ROW_ALIGN))
    num_blocks = pl.cdiv(rows, block_rows)
    block_elems = block_rows * _LANES
    valid_in_last = n - (num_blocks - 1) * block_elems   # static, >= 1
    has_tail = valid_in_last < block_elems

    kernel = _make_kernel(block_rows, num_blocks, valid_in_last, has_tail)

    in_spec = pl.BlockSpec((block_rows, _LANES), lambda i: (i, 0))
    out_spec = pl.BlockSpec((_SUB, _LANES), lambda i: (0, 0))
    partial_shape = jax.ShapeDtypeStruct((_SUB, _LANES), jnp.float32)

    out_bytes = 3 * _SUB * _LANES * 4
    cost = pl.CostEstimate(
        flops=10 * n,
        transcendentals=2 * n,   # exp + log1p per element (approx rcp is near-free)
        bytes_accessed=n * (x2.dtype.itemsize + t2.dtype.itemsize) + out_bytes,
    )

    bce_part, inter_part, denom_part = pl.pallas_call(
        kernel,
        out_shape=(partial_shape, partial_shape, partial_shape),
        grid_spec=pltpu.PrefetchScalarGridSpec(
            num_scalar_prefetch=0,
            grid=(num_blocks,),
            in_specs=[in_spec, in_spec],
            out_specs=[out_spec, out_spec, out_spec],
        ),
        compiler_params=pltpu.CompilerParams(
            dimension_semantics=("arbitrary",),   # resident accumulator across the grid
            vmem_limit_bytes=_VMEM_LIMIT,
        ),
        cost_estimate=cost,
    )(x2, t2)

    # Tiny final combine (3 x (8,128) f32) in plain JAX.
    bce_mean = jnp.sum(bce_part) / float(n)
    intersection = jnp.sum(inter_part)
    denom = jnp.sum(denom_part)
    dice_coef = (2.0 * intersection + smooth) / (denom + smooth)
    dice_loss = 1.0 - dice_coef
    return dice_weight * dice_loss + (1.0 - dice_weight) * bce_mean


def combined_loss_ref(outputs, targets, smooth=1.0, dice_weight=0.5):
    """Pure-JAX reference matching the PyTorch module."""
    x = outputs.astype(jnp.float32)
    t = targets.astype(jnp.float32)
    bce = jnp.mean(jnp.maximum(x, 0.0) - x * t + jnp.log1p(jnp.exp(-jnp.abs(x))))
    p = jax.nn.sigmoid(x)
    inter = jnp.sum(p * t)
    dice_coef = (2.0 * inter + smooth) / (jnp.sum(p) + jnp.sum(t) + smooth)
    dice_loss = 1.0 - dice_coef
    return dice_weight * dice_loss + (1.0 - dice_weight) * bce


if __name__ == "__main__":
    key = jax.random.PRNGKey(0)
    k1, k2 = jax.random.split(key)
    # CombinedLoss has no learned parameters (smooth=1, dice_weight=0.5).
    B, C, H, W = 2, 4, 16, 16  # NCHW, as the PyTorch module expects
    outputs = jax.random.normal(k1, (B, C, H, W), dtype=jnp.float32)   # logits
    targets = jax.random.bernoulli(k2, 0.3, (B, C, H, W)).astype(jnp.float32)

    loss = combined_loss_pallas(outputs, targets, smooth=1.0, dice_weight=0.5)
    loss = jax.block_until_ready(loss)

    ref = combined_loss_ref(outputs, targets, smooth=1.0, dice_weight=0.5)
    # Tolerance loosened (per review) because the sigmoid uses the EUP approximate
    # reciprocal; the exp/log1p BCE path is still full-precision f32.
    assert jnp.allclose(loss, ref, rtol=2e-3, atol=2e-3), (loss, ref)

    print("KERNEL_OK")
</pallas_src>

<mosaic_0001>
module attributes {stable_mosaic.version = 11 : i64} {
  func.func @kernel(%arg0: i32, %arg1: memref<16x128xf32, #tpu.memory_space<vmem>>, %arg2: memref<16x128xf32, #tpu.memory_space<vmem>>, %arg3: memref<8x128xf32, #tpu.memory_space<vmem>>, %arg4: memref<8x128xf32, #tpu.memory_space<vmem>>, %arg5: memref<8x128xf32, #tpu.memory_space<vmem>>) attributes {dimension_semantics = [#tpu.dimension_semantics<arbitrary>], iteration_bounds = array<i64: 1>, scalar_prefetch = 0 : i64, scratch_operands = 0 : i64, tpu.core_type = #tpu.core_type<tc>, window_params = [{transform_indices = @transform_0, window_bounds = array<i64: 16, 128>}, {transform_indices = @transform_1, window_bounds = array<i64: 16, 128>}, {pipeline_mode = #tpu.pipeline_mode<synchronous>, transform_indices = @transform_2, window_bounds = array<i64: 8, 128>}, {pipeline_mode = #tpu.pipeline_mode<synchronous>, transform_indices = @transform_3, window_bounds = array<i64: 8, 128>}, {pipeline_mode = #tpu.pipeline_mode<synchronous>, transform_indices = @transform_4, window_bounds = array<i64: 8, 128>}]} {
    %c0_i32 = arith.constant 0 : i32
    %0 = arith.cmpi eq, %arg0, %c0_i32 : i32
    %1 = arith.extui %0 : i1 to i32
    %c0_i32_0 = arith.constant 0 : i32
    %2 = arith.cmpi ne, %1, %c0_i32_0 : i32
    scf.if %2 {
      %cst_23 = arith.constant 0.000000e+00 : f32
      %40 = vector.broadcast %cst_23 : f32 to vector<8x128xf32>
      %c0_24 = arith.constant 0 : index
      %c0_25 = arith.constant 0 : index
      %41 = vector.load %arg3[%c0_24, %c0_25] : memref<8x128xf32, #tpu.memory_space<vmem>>, vector<8x128xf32>
      tpu.vector_store %arg3[%c0_24, %c0_25], %40 {strides = array<i32>} : memref<8x128xf32, #tpu.memory_space<vmem>>, vector<8x128xf32>,
      %cst_26 = arith.constant 0.000000e+00 : f32
      %42 = vector.broadcast %cst_26 : f32 to vector<8x128xf32>
      %c0_27 = arith.constant 0 : index
      %c0_28 = arith.constant 0 : index
      %43 = vector.load %arg4[%c0_27, %c0_28] : memref<8x128xf32, #tpu.memory_space<vmem>>, vector<8x128xf32>
      tpu.vector_store %arg4[%c0_27, %c0_28], %42 {strides = array<i32>} : memref<8x128xf32, #tpu.memory_space<vmem>>, vector<8x128xf32>,
      %cst_29 = arith.constant 0.000000e+00 : f32
      %44 = vector.broadcast %cst_29 : f32 to vector<8x128xf32>
      %c0_30 = arith.constant 0 : index
      %c0_31 = arith.constant 0 : index
      %45 = vector.load %arg5[%c0_30, %c0_31] : memref<8x128xf32, #tpu.memory_space<vmem>>, vector<8x128xf32>
      tpu.vector_store %arg5[%c0_30, %c0_31], %44 {strides = array<i32>} : memref<8x128xf32, #tpu.memory_space<vmem>>, vector<8x128xf32>,
    } else {
    }
    %c0 = arith.constant 0 : index
    %c0_1 = arith.constant 0 : index
    %3 = vector.load %arg1[%c0, %c0_1] : memref<16x128xf32, #tpu.memory_space<vmem>>, vector<16x128xf32>
    %c0_2 = arith.constant 0 : index
    %c0_3 = arith.constant 0 : index
    %4 = vector.load %arg2[%c0_2, %c0_3] : memref<16x128xf32, #tpu.memory_space<vmem>>, vector<16x128xf32>
    %5 = math.absf %3 : vector<16x128xf32>
    %cst = arith.constant 0.000000e+00 : f32
    %6 = vector.broadcast %cst : f32 to vector<16x128xf32>
    %7 = arith.subf %6, %5 : vector<16x128xf32>
    %8 = math.exp %7 : vector<16x128xf32>
    %cst_4 = arith.constant 0.000000e+00 : f32
    %9 = vector.broadcast %cst_4 : f32 to vector<16x128xf32>
    %10 = arith.maximumf %3, %9 : vector<16x128xf32>
    %11 = arith.mulf %3, %4 : vector<16x128xf32>
    %12 = arith.subf %10, %11 : vector<16x128xf32>
    %13 = math.log1p %8 : vector<16x128xf32>
    %14 = arith.addf %12, %13 : vector<16x128xf32>
    %cst_5 = arith.constant 0.000000e+00 : f32
    %15 = vector.broadcast %cst_5 : f32 to vector<16x128xf32>
    %16 = arith.cmpf oge, %3, %15 : vector<16x128xf32>
    %cst_6 = arith.constant 1.000000e+00 : f32
    %17 = vector.broadcast %cst_6 : f32 to vector<16x128xf32>
    %18 = arith.select %16, %17, %8 : vector<16x128xi1>, vector<16x128xf32>
    %cst_7 = arith.constant 1.000000e+00 : f32
    %19 = vector.broadcast %cst_7 : f32 to vector<16x128xf32>
    %20 = arith.addf %19, %8 : vector<16x128xf32>
    %21 = tpu.reciprocal %20 {approx = true} : vector<16x128xf32> -> vector<16x128xf32>
    %22 = arith.mulf %18, %21 : vector<16x128xf32>
    %c0_8 = arith.constant 0 : index
    %c0_9 = arith.constant 0 : index
    %23 = vector.load %arg3[%c0_8, %c0_9] : memref<8x128xf32, #tpu.memory_space<vmem>>, vector<8x128xf32>
    %24 = vector.shape_cast %14 : vector<16x128xf32> to vector<2x8x128xf32>
    %cst_10 = arith.constant dense<0.000000e+00> : vector<8x128xf32>
    %25 = vector.multi_reduction <add>, %24, %cst_10 [0] : vector<2x8x128xf32> to vector<8x128xf32>
    %26 = arith.addf %23, %25 : vector<8x128xf32>
    %c0_11 = arith.constant 0 : index
    %c0_12 = arith.constant 0 : index
    %27 = vector.load %arg3[%c0_11, %c0_12] : memref<8x128xf32, #tpu.memory_space<vmem>>, vector<8x128xf32>
    tpu.vector_store %arg3[%c0_11, %c0_12], %26 {strides = array<i32>} : memref<8x128xf32, #tpu.memory_space<vmem>>, vector<8x128xf32>,
    %c0_13 = arith.constant 0 : index
    %c0_14 = arith.constant 0 : index
    %28 = vector.load %arg4[%c0_13, %c0_14] : memref<8x128xf32, #tpu.memory_space<vmem>>, vector<8x128xf32>
    %29 = arith.mulf %22, %4 : vector<16x128xf32>
    %30 = vector.shape_cast %29 : vector<16x128xf32> to vector<2x8x128xf32>
    %cst_15 = arith.constant dense<0.000000e+00> : vector<8x128xf32>
    %31 = vector.multi_reduction <add>, %30, %cst_15 [0] : vector<2x8x128xf32> to vector<8x128xf32>
    %32 = arith.addf %28, %31 : vector<8x128xf32>
    %c0_16 = arith.constant 0 : index
    %c0_17 = arith.constant 0 : index
    %33 = vector.load %arg4[%c0_16, %c0_17] : memref<8x128xf32, #tpu.memory_space<vmem>>, vector<8x128xf32>
    tpu.vector_store %arg4[%c0_16, %c0_17], %32 {strides = array<i32>} : memref<8x128xf32, #tpu.memory_space<vmem>>, vector<8x128xf32>,
    %c0_18 = arith.constant 0 : index
    %c0_19 = arith.constant 0 : index
    %34 = vector.load %arg5[%c0_18, %c0_19] : memref<8x128xf32, #tpu.memory_space<vmem>>, vector<8x128xf32>
    %35 = arith.addf %22, %4 : vector<16x128xf32>
    %36 = vector.shape_cast %35 : vector<16x128xf32> to vector<2x8x128xf32>
    %cst_20 = arith.constant dense<0.000000e+00> : vector<8x128xf32>
    %37 = vector.multi_reduction <add>, %36, %cst_20 [0] : vector<2x8x128xf32> to vector<8x128xf32>
    %38 = arith.addf %34, %37 : vector<8x128xf32>
    %c0_21 = arith.constant 0 : index
    %c0_22 = arith.constant 0 : index
    %39 = vector.load %arg5[%c0_21, %c0_22] : memref<8x128xf32, #tpu.memory_space<vmem>>, vector<8x128xf32>
    tpu.vector_store %arg5[%c0_21, %c0_22], %38 {strides = array<i32>} : memref<8x128xf32, #tpu.memory_space<vmem>>, vector<8x128xf32>,
    return
  }
  func.func @transform_0(%arg0: i32) -> (i32, i32) {
    %c0_i32 = arith.constant 0 : i32
    %c0_i32_0 = arith.constant 0 : i32
    return %arg0, %c0_i32 : i32, i32
  }
  func.func @transform_1(%arg0: i32) -> (i32, i32) {
    %c0_i32 = arith.constant 0 : i32
    %c0_i32_0 = arith.constant 0 : i32
    return %arg0, %c0_i32 : i32, i32
  }
  func.func @transform_2(%arg0: i32) -> (i32, i32) {
    %c0_i32 = arith.constant 0 : i32
    %c0_i32_0 = arith.constant 0 : i32
    %c0_i32_1 = arith.constant 0 : i32
    return %c0_i32, %c0_i32_0 : i32, i32
  }
  func.func @transform_3(%arg0: i32) -> (i32, i32) {
    %c0_i32 = arith.constant 0 : i32
    %c0_i32_0 = arith.constant 0 : i32
    %c0_i32_1 = arith.constant 0 : i32
    return %c0_i32, %c0_i32_0 : i32, i32
  }
  func.func @transform_4(%arg0: i32) -> (i32, i32) {
    %c0_i32 = arith.constant 0 : i32
    %c0_i32_0 = arith.constant 0 : i32
    %c0_i32_1 = arith.constant 0 : i32
    return %c0_i32, %c0_i32_0 : i32, i32
  }
}

</mosaic_0001>

<llo_original>
// kernel: tpu_custom_call.1
$region0: #{tpu_custom_call.1}
  #allocation0 [shape = 'u32[]', space=smem, size = 0x4, offset = 0x4, fixed_abs, tag = 'smem constant byte address 0x4 - core index']
  #allocation1 [shape = 'u32[144,128]{1,0:T(1,128)}', space=vmem, size = 0x12000, scoped, tag = 'internal scratch']
  %s0 = inlined_call_operand.hbm [shape: f32[16,128], index: 0, kind: input, shape index: {}]
  %s1 = inlined_call_operand.hbm [shape: f32[16,128], index: 1, kind: input, shape index: {}]
  %s2 = inlined_call_operand.hbm [shape: f32[8,128], index: 2, kind: output, shape index: {0}]
  %s3 = inlined_call_operand.hbm [shape: f32[8,128], index: 3, kind: output, shape index: {1}]
  %s4 = inlined_call_operand.hbm [shape: f32[8,128], index: 4, kind: output, shape index: {2}]
  %5 = xla_tuple %s2, %s3, %s4
  %s6 = sld [smem:[#allocation0]]
  $region46: #{tpu_custom_call.1} parent=0
    _
  %s8 = ssub.s32 1, %s6
  %s9 = scalar_select 0, %s8, %s6
  $region1: #{tpu_custom_call.1} parent=0
    #allocation2 [shape = 'u8[8192]{0}', space=vmem, size = 0x2000, scoped, tag = 'input window, operand 0, single buffered']
    #allocation3 [shape = 's32[1]{0}', space=sflag, size = 0x4, scoped, tag = 'scoped memory for tpu_custom_call.1']
    #allocation4 [shape = 's32[1]{0}', space=sflag, size = 0x4, scoped, tag = 'scoped memory for tpu_custom_call.1']
    #allocation5 [shape = 'u8[8192]{0}', space=vmem, size = 0x2000, scoped, tag = 'input window, operand 1, single buffered']
    #allocation6 [shape = 's32[1]{0}', space=sflag, size = 0x4, scoped, tag = 'scoped memory for tpu_custom_call.1']
    #allocation7 [shape = 'u8[4096]{0}', space=vmem, size = 0x1000, scoped, tag = 'output window, operand 0, single buffered']
    #allocation8 [shape = 'u8[4096]{0}', space=vmem, size = 0x1000, scoped, tag = 'output window, operand 1, single buffered']
    #allocation9 [shape = 's32[1]{0}', space=sflag, size = 0x4, scoped, tag = 'scoped memory for tpu_custom_call.1']
    #allocation10 [shape = 'u8[4096]{0}', space=vmem, size = 0x1000, scoped, tag = 'output window, operand 2, single buffered']
    %10 = vsyncpa [#allocation3], 0
    %11 = vsyncpa [#allocation6], 0
    %12 = vsyncpa [#allocation4], 0
    %13 = vsyncpa [#allocation9], 0
    // Predicated region
    $region2: #{tpu_custom_call.1} parent=1 // pred_check
      _
    $region3: #{tpu_custom_call.1} parent=1 // pred_check_branch
      %15 = sbr.rel (0) target = $region5
    $region4: #{tpu_custom_call.1} parent=1 // pred_region
      %s17 = ssub.s32 256, 256
      %18 = vsyncadd [#allocation3], %s17
      %s19 = sshll.u32 [#allocation2], 4
      %s20 = int_to_ptr.vmem [resolvable:$true] %s19
      %25 = dma.hbm_to_vmem [thread:$0]  %s0, 256, %s20, [#allocation3], 128, 128, 8
    $region5: #{tpu_custom_call.1} parent=1 // pred_fallthru
      _
    // Predicated region
    $region6: #{tpu_custom_call.1} parent=1 // pred_check
      _
    $region7: #{tpu_custom_call.1} parent=1 // pred_check_branch
      %27 = sbr.rel (0) target = $region9
    $region8: #{tpu_custom_call.1} parent=1 // pred_region
      %s29 = ssub.s32 256, 256
      %30 = vsyncadd [#allocation6], %s29
      %s31 = sshll.u32 [#allocation5], 4
      %s32 = int_to_ptr.vmem [resolvable:$true] %s31
      %37 = dma.hbm_to_vmem [thread:$0]  %s1, 256, %s32, [#allocation6], 128, 128, 8
    $region9: #{tpu_custom_call.1} parent=1 // pred_fallthru
      _
    // Predicated region
    $region10: #{tpu_custom_call.1} parent=1 // pred_check
      _
    $region11: #{tpu_custom_call.1} parent=1 // pred_check_branch
      %39 = sbr.rel (0) target = $region13
    $region12: #{tpu_custom_call.1} parent=1 // pred_region
      %40 = dma.done [#allocation3], 256
    $region13: #{tpu_custom_call.1} parent=1 // pred_fallthru
      _
    // Predicated region
    $region14: #{tpu_custom_call.1} parent=1 // pred_check
      _
    $region15: #{tpu_custom_call.1} parent=1 // pred_check_branch
      %42 = sbr.rel (0) target = $region17
    $region16: #{tpu_custom_call.1} parent=1 // pred_region
      %43 = dma.done [#allocation6], 256
    $region17: #{tpu_custom_call.1} parent=1 // pred_fallthru
      _
    %p44 = scmp.eq.s32.totalorder 0, 0
    // Predicated region
    $region18: #{tpu_custom_call.1} parent=1 // pred_check
      %p45 = pneg %p44
    $region19: #{tpu_custom_call.1} parent=1 // pred_check_branch
      %47 = sbr.rel (%p45) target = $region21
    $region20: #{tpu_custom_call.1} parent=1 // pred_region
      %48 = vst [vmem:[#allocation7] sm:$0xff] 0.0
      %49 = vst [vmem:[#allocation8] sm:$0xff] 0.0
      %50 = vst [vmem:[#allocation10] sm:$0xff] 0.0
    $region21: #{tpu_custom_call.1} parent=1 // pred_fallthru
      _
    %v51 = vld [vmem:[#allocation2] sm:$0xff]
    %v52 = vld [vmem:[#allocation2 + $0x8] sm:$0xff]
    %v53 = vld [vmem:[#allocation5] sm:$0xff]
    %v54 = vld [vmem:[#allocation5 + $0x8] sm:$0xff]
    %v55 = vand.u32 2147483647, %v51
    %v56 = vand.u32 2147483647, %v52
    %v57 = vsub.f32 0.0, %v55
    %v58 = vsub.f32 0.0, %v56
    %v59 = vmul.f32 %v57, 1.442695
    %v60 = vpow.pop %v59
    %v61 = vmul.f32 %v58, 1.442695
    %v62 = vpow.pop %v61
    %v63 = vmax.f32 %v51, 0.0
    %v64 = vmax.f32 %v52, 0.0
    %v65 = vmul.f32 %v51, %v53
    %v66 = vmul.f32 %v52, %v54
    %v67 = vsub.f32 %v63, %v65
    %v68 = vsub.f32 %v64, %v66
    %v69 = vadd.f32 %v60, 1.0
    %v70 = vlog2.pop %v69
    %v71 = vmul.f32 %v70, 0.6931472
    %v72 = vmul.f32 -0.5, %v60
    %v73 = vadd.f32 %v72, 1.0
    %v74 = vmul.f32 %v73, %v60
    %v75 = vand.u32 2147483647, %v60
    %vm76 = vcmp.lt.f32.partialorder %v75, 0.0004427343
    %v77 = vsel %vm76, %v74, %v71
    %v78 = vadd.f32 %v62, 1.0
    %v79 = vlog2.pop %v78
    %v80 = vmul.f32 %v79, 0.6931472
    %v81 = vmul.f32 -0.5, %v62
    %v82 = vadd.f32 %v81, 1.0
    %v83 = vmul.f32 %v82, %v62
    %v84 = vand.u32 2147483647, %v62
    %vm85 = vcmp.lt.f32.partialorder %v84, 0.0004427343
    %v86 = vsel %vm85, %v83, %v80
    %v87 = vadd.f32 %v67, %v77
    %v88 = vadd.f32 %v68, %v86
    %vm89 = vcmp.ge.f32.partialorder %v51, 0.0
    %vm90 = vcmp.ge.f32.partialorder %v52, 0.0
    %v91 = vsel %vm89, 1.0, %v60
    %v92 = vsel %vm90, 1.0, %v62
    %v93 = vadd.f32 %v60, 1.0
    %v94 = vadd.f32 %v62, 1.0
    %v95 = vrcp.pop %v93
    %v96 = vrcp.pop %v94
    %v97 = vmul.f32 %v91, %v95
    %v98 = vmul.f32 %v92, %v96
    %v99 = vld [vmem:[#allocation7] sm:$0xff]
    %v100 = vadd.f32 %v87, %v88
    %v101 = vadd.f32 %v99, %v100
    %102 = vst [vmem:[#allocation7] sm:$0xff] %v101
    %v103 = vld [vmem:[#allocation8] sm:$0xff]
    %v104 = vmul.f32 %v97, %v53
    %v105 = vmul.f32 %v98, %v54
    %v106 = vadd.f32 %v104, %v105
    %v107 = vadd.f32 %v103, %v106
    %108 = vst [vmem:[#allocation8] sm:$0xff] %v107
    %v109 = vld [vmem:[#allocation10] sm:$0xff]
    %v110 = vadd.f32 %v97, %v53
    %v111 = vadd.f32 %v98, %v54
    %v112 = vadd.f32 %v110, %v111
    %v113 = vadd.f32 %v109, %v112
    %114 = vst [vmem:[#allocation10] sm:$0xff] %v113
    // Predicated region
    $region22: #{tpu_custom_call.1} parent=1 // pred_check
      _
    $region23: #{tpu_custom_call.1} parent=1 // pred_check_branch
      %116 = sbr.rel (0) target = $region25
    $region24: #{tpu_custom_call.1} parent=1 // pred_region
      %s118 = ssub.s32 128, 128
      %119 = vsyncadd [#allocation4], %s118
      %s121 = sshll.u32 [#allocation7], 4
      %s122 = int_to_ptr.vmem [resolvable:$true] %s121
      %124 = dma.vmem_to_hbm [thread:$0]  %s122, 128, %s2, [#allocation4]
    $region25: #{tpu_custom_call.1} parent=1 // pred_fallthru
      _
    // Predicated region
    $region26: #{tpu_custom_call.1} parent=1 // pred_check
      _
    $region27: #{tpu_custom_call.1} parent=1 // pred_check_branch
      %126 = sbr.rel (0) target = $region29
    $region28: #{tpu_custom_call.1} parent=1 // pred_region
      %s128 = ssub.s32 128, 128
      %129 = vsyncadd [#allocation9], %s128
      %s131 = sshll.u32 [#allocation8], 4
      %s132 = int_to_ptr.vmem [resolvable:$true] %s131
      %134 = dma.vmem_to_hbm [thread:$0]  %s132, 128, %s3, [#allocation9]
    $region29: #{tpu_custom_call.1} parent=1 // pred_fallthru
      _
    // Predicated region
    $region30: #{tpu_custom_call.1} parent=1 // pred_check
      _
    $region31: #{tpu_custom_call.1} parent=1 // pred_check_branch
      %136 = sbr.rel (0) target = $region33
    $region32: #{tpu_custom_call.1} parent=1 // pred_region
      %s138 = ssub.s32 128, 128
      %139 = vsyncadd [#allocation9], %s138
      %s141 = sshll.u32 [#allocation10], 4
      %s142 = int_to_ptr.vmem [resolvable:$true] %s141
      %144 = dma.vmem_to_hbm [thread:$0]  %s142, 128, %s4, [#allocation9]
    $region33: #{tpu_custom_call.1} parent=1 // pred_fallthru
      _
    // Predicated region
    $region34: #{tpu_custom_call.1} parent=1 // pred_check
      _
    $region35: #{tpu_custom_call.1} parent=1 // pred_check_branch
      %146 = sbr.rel (0) target = $region37
    $region36: #{tpu_custom_call.1} parent=1 // pred_region
      %147 = dma.done [#allocation4], 128
    $region37: #{tpu_custom_call.1} parent=1 // pred_fallthru
      _
    // Predicated region
    $region38: #{tpu_custom_call.1} parent=1 // pred_check
      _
    $region39: #{tpu_custom_call.1} parent=1 // pred_check_branch
      %149 = sbr.rel (0) target = $region41
    $region40: #{tpu_custom_call.1} parent=1 // pred_region
      %150 = dma.done [#allocation9], 128
    $region41: #{tpu_custom_call.1} parent=1 // pred_fallthru
      _
    // Predicated region
    $region42: #{tpu_custom_call.1} parent=1 // pred_check
      _
    $region43: #{tpu_custom_call.1} parent=1 // pred_check_branch
      %152 = sbr.rel (0) target = $region45
    $region44: #{tpu_custom_call.1} parent=1 // pred_region
      %153 = dma.done [#allocation9], 128
    $region45: #{tpu_custom_call.1} parent=1 // pred_fallthru
      _
    %154 = vsyncpa [#allocation3], 1
    %155 = vsyncpa [#allocation6], 1
    %156 = vsyncpa [#allocation4], 1
    %157 = vsyncpa [#allocation9], 1

</llo_original>
